<compile_context>
chip_gen: v5e
topology: v5e:2x2
jax: 0.10.0
libtpu: 0.0.40
codegen_flags: <defaults>
</compile_context>

<pallas_src>
import functools

import jax
import jax.numpy as jnp
from jax import lax
from jax.experimental import pallas as pl
from jax.experimental.pallas import tpu as pltpu


def _round_up(x, m):
    return ((x + m - 1) // m) * m


def _crf_denominator_kernel(emis_ref, mask_ref, end_ref, trans_ref,
                            out_ref, alpha_ref):
    """Log-partition (denominator) recurrence, lane-dense over batch.

    emis_ref  : (tc, K, tb) transport dtype; start_transitions are pre-folded
                into global timestep 0 by the wrapper.
    mask_ref  : (tc, tb)    transport dtype in {0,1}; global row 0 is zeroed
                by the wrapper so the i==0 iteration of the first chunk is a
                no-op (matching the reference loop that starts at t=1).
    end_ref   : (K, 1)  f32   end transitions (broadcast over batch lanes).
    trans_ref : (K, K)  f32   transitions[prev, next].
    out_ref   : (1, tb) f32   logsumexp over tags of (final alpha + end).
    alpha_ref : (K, tb) f32   scratch; carries alpha across time chunks.
    """
    t_idx = pl.program_id(1)
    tc = emis_ref.shape[0]

    # --- init at the first time chunk of this batch tile -------------------
    @pl.when(t_idx == 0)
    def _init():
        alpha_ref[...] = emis_ref[0].astype(jnp.float32)  # start already folded

    trans3 = trans_ref[...][:, :, None]                   # (K, K, 1), hoisted

    def body(i, alpha):
        emis_i = emis_ref[i].astype(jnp.float32)                  # (K, tb)
        m_i = mask_ref[pl.ds(i, 1), :].astype(jnp.float32)        # (1, tb)
        # Fused logsumexp over previous tags.  Leading axis = prev-tag, so the
        # reductions below are elementwise combines of K vregs (VPU only).
        x = alpha[:, None, :] + trans3                            # (K, K, tb)
        mx = jnp.max(x, axis=0)                                   # (K, tb)
        s = jnp.sum(jnp.exp(x - mx[None, :, :]), axis=0)          # (K, tb)
        nxt = emis_i + mx + jnp.log(s)                            # (K, tb)
        # Exact masked update (matches torch.where semantics even for
        # non-finite emissions at padded steps).  The arithmetic blend
        # alpha + m*(nxt-alpha) is an alternative for v5e store pressure.
        return jnp.where(m_i > 0.0, nxt, alpha)

    alpha = lax.fori_loop(0, tc, body, alpha_ref[...], unroll=min(8, tc))
    alpha_ref[...] = alpha

    # --- finalize at the last time chunk ------------------------------------
    @pl.when(t_idx == pl.num_programs(1) - 1)
    def _finalize():
        a = alpha + end_ref[...]                                  # (K, tb)
        mx = jnp.max(a, axis=0, keepdims=True)                    # (1, tb)
        out_ref[...] = mx + jnp.log(
            jnp.sum(jnp.exp(a - mx), axis=0, keepdims=True))


@functools.partial(jax.jit, static_argnames=("reduction", "transport_dtype"))
def crf_forward(emissions, tags, mask, start_transitions, end_transitions,
                transitions, reduction="mean", transport_dtype=jnp.float32):
    """CRF.forward with batch_first=True semantics.

    emissions : (B, T, K) float32
    tags      : (B, T)    int
    mask      : (B, T)    uint8/bool (mask[:, 0] must be all on)
    Returns scalar NLL for reduction in {'sum','mean','token_mean'}, or (B,)
    for reduction='none'.
    """
    B, T, K = emissions.shape

    # Time-major views (the module's internal layout).
    emis_tm = jnp.transpose(emissions, (1, 0, 2)).astype(jnp.float32)  # (T,B,K)
    tags_tm = jnp.transpose(tags, (1, 0)).astype(jnp.int32)            # (T,B)
    mask_tm = jnp.transpose(mask, (1, 0)).astype(jnp.float32)          # (T,B)

    start = start_transitions.reshape(K).astype(jnp.float32)
    end = end_transitions.reshape(K).astype(jnp.float32)
    trans = transitions.astype(jnp.float32)

    # --------- gold-path (numerator) score: trivial integer gathers --------
    b_idx = jnp.arange(B)
    numerator = start[tags_tm[0]] + emis_tm[0, b_idx, tags_tm[0]]      # (B,)
    if T > 1:
        prev_t = tags_tm[:-1]                                          # (T-1,B)
        cur_t = tags_tm[1:]                                            # (T-1,B)
        trans_sc = trans[prev_t, cur_t]                                # (T-1,B)
        emit_sc = jnp.take_along_axis(
            emis_tm[1:], cur_t[..., None], axis=-1)[..., 0]            # (T-1,B)
        numerator = numerator + jnp.sum(
            (trans_sc + emit_sc) * mask_tm[1:], axis=0)
    seq_ends = jnp.sum(mask_tm, axis=0).astype(jnp.int32) - 1          # (B,)
    last_tags = tags_tm[seq_ends, b_idx]                               # (B,)
    numerator = numerator + end[last_tags]

    # --------- denominator (log-partition) via the Pallas kernel ------------
    itemsize = jnp.dtype(transport_dtype).itemsize
    # Batch tile on the 128-lane axis; keep the (K,K,tb) temporary bounded.
    tb = min(512, _round_up(B, 128)) if K <= 8 else 128
    B_pad = _round_up(B, tb)
    # Time-chunk size: ~2 MiB emissions block, multiple of 8 (sublane rule).
    budget = 2 * 1024 * 1024
    tc = max(8, min(_round_up(T, 8),
                    (budget // (K * tb * itemsize)) // 8 * 8,
                    256))
    T_pad = _round_up(T, tc)

    # Lane-dense (T, K, B) layout; fold start transitions into timestep 0.
    emis_kb = jnp.transpose(emis_tm, (0, 2, 1))                        # (T,K,B)
    emis_kb = emis_kb.at[0].add(start[:, None])
    emis_kb = jnp.pad(emis_kb, ((0, T_pad - T), (0, 0), (0, B_pad - B)))
    emis_kb = emis_kb.astype(transport_dtype)

    mask_k = mask_tm.at[0].set(0.0)                # kernel recurrence skips t=0
    mask_k = jnp.pad(mask_k, ((0, T_pad - T), (0, B_pad - B)))
    mask_k = mask_k.astype(transport_dtype)

    end_col = end.reshape(K, 1)

    grid = (B_pad // tb, T_pad // tc)
    block_bytes = tc * K * tb * itemsize + tc * tb * itemsize
    vmem_limit = int(min(64 * 1024 * 1024,
                         max(16 * 1024 * 1024,
                             4 * block_bytes + 4 * 1024 * 1024)))

    denom = pl.pallas_call(
        _crf_denominator_kernel,
        out_shape=jax.ShapeDtypeStruct((1, B_pad), jnp.float32),
        grid_spec=pltpu.PrefetchScalarGridSpec(
            num_scalar_prefetch=0,
            grid=grid,
            in_specs=[
                pl.BlockSpec((tc, K, tb), lambda b, t: (t, 0, b)),
                pl.BlockSpec((tc, tb), lambda b, t: (t, b)),
                pl.BlockSpec((K, 1), lambda b, t: (0, 0)),
                pl.BlockSpec((K, K), lambda b, t: (0, 0)),
            ],
            out_specs=pl.BlockSpec((1, tb), lambda b, t: (0, b)),
            scratch_shapes=[pltpu.VMEM((K, tb), jnp.float32)],
        ),
        compiler_params=pltpu.CompilerParams(
            dimension_semantics=("parallel", "arbitrary"),
            vmem_limit_bytes=vmem_limit,
        ),
    )(emis_kb, mask_k, end_col, trans)
    denom = denom[0, :B]                                               # (B,)

    nllh = denom - numerator
    if reduction == "none":
        return nllh
    if reduction == "sum":
        return jnp.sum(nllh)
    if reduction == "mean":
        return jnp.mean(nllh)
    # token_mean
    return jnp.sum(nllh) / jnp.sum(mask_tm)


def crf_forward_ref(emissions, tags, mask, start_t, end_t, trans):
    """Pure-JAX reference mirroring the PyTorch module (reduction='mean')."""
    emis = jnp.transpose(emissions, (1, 0, 2)).astype(jnp.float32)
    tags_tm = jnp.transpose(tags, (1, 0)).astype(jnp.int32)
    mask_tm = jnp.transpose(mask, (1, 0)).astype(jnp.float32)
    T, B = tags_tm.shape

    score = start_t[tags_tm[0]] + emis[0, jnp.arange(B), tags_tm[0]]
    for i in range(1, T):
        score += trans[tags_tm[i - 1], tags_tm[i]] * mask_tm[i]
        score += emis[i, jnp.arange(B), tags_tm[i]] * mask_tm[i]
    seq_ends = mask_tm.sum(0).astype(jnp.int32) - 1
    last_tags = tags_tm[seq_ends, jnp.arange(B)]
    score += end_t[last_tags]

    alpha = start_t[None, :] + emis[0]
    for i in range(1, T):
        x = alpha[:, :, None] + trans[None, :, :] + emis[i][:, None, :]
        ns = jax.scipy.special.logsumexp(x, axis=1)
        alpha = jnp.where(mask_tm[i][:, None] > 0, ns, alpha)
    denom = jax.scipy.special.logsumexp(alpha + end_t[None, :], axis=1)
    return jnp.mean(denom - score)


if __name__ == "__main__":
    B, T, K = 2, 8, 2  # batch, seq, num_tags (module default num_tags=2)
    init_range = 0.1

    key = jax.random.PRNGKey(0)
    k_emis, k_tags, k_start, k_end, k_trans = jax.random.split(key, 5)

    # Deterministic parameter init: uniform(-0.1, 0.1), matching reset_parameters.
    start_transitions = jax.random.uniform(
        k_start, (K,), jnp.float32, -init_range, init_range)
    end_transitions = jax.random.uniform(
        k_end, (K,), jnp.float32, -init_range, init_range)
    transitions = jax.random.uniform(
        k_trans, (K, K), jnp.float32, -init_range, init_range)

    # Inputs (batch_first=True): emissions (B,T,K), tags (B,T), mask (B,T).
    emissions = jax.random.normal(k_emis, (B, T, K), jnp.float32)
    tags = jax.random.randint(k_tags, (B, T), 0, K, jnp.int32)
    # mask[:, 0] must be all on; second sequence is shorter (length 6).
    mask = jnp.array(
        [[1] * T,
         [1] * 6 + [0] * (T - 6)], dtype=jnp.uint8)

    out = crf_forward(emissions, tags, mask, start_transitions,
                      end_transitions, transitions, reduction="mean")
    out = jax.block_until_ready(out)

    ref = crf_forward_ref(emissions, tags, mask, start_transitions,
                          end_transitions, transitions)
    assert jnp.allclose(out, ref, rtol=1e-4, atol=1e-4), (out, ref)

    print("KERNEL_OK")
</pallas_src>

<mosaic_0001>
module attributes {stable_mosaic.version = 11 : i64} {
  func.func @_crf_denominator_kernel(%arg0: i32, %arg1: i32, %arg2: memref<8x2x128xf32, #tpu.memory_space<vmem>>, %arg3: memref<8x128xf32, #tpu.memory_space<vmem>>, %arg4: memref<2x1xf32, #tpu.memory_space<vmem>>, %arg5: memref<2x2xf32, #tpu.memory_space<vmem>>, %arg6: memref<1x128xf32, #tpu.memory_space<vmem>>, %arg7: memref<2x128xf32, #tpu.memory_space<vmem>>) attributes {dimension_semantics = [#tpu.dimension_semantics<parallel>, #tpu.dimension_semantics<arbitrary>], iteration_bounds = array<i64: 1, 1>, scalar_prefetch = 0 : i64, scratch_operands = 1 : i64, tpu.core_type = #tpu.core_type<tc>, window_params = [{transform_indices = @transform_0, window_bounds = array<i64: 8, 2, 128>}, {transform_indices = @transform_1, window_bounds = array<i64: 8, 128>}, {pipeline_mode = #tpu.pipeline_mode<synchronous>, transform_indices = @transform_2, window_bounds = array<i64: 2, 1>}, {pipeline_mode = #tpu.pipeline_mode<synchronous>, transform_indices = @transform_3, window_bounds = array<i64: 2, 2>}, {transform_indices = @transform_4, window_bounds = array<i64: 1, 128>}]} {
    %c0_i32 = arith.constant 0 : i32
    %0 = arith.cmpi eq, %arg1, %c0_i32 : i32
    %1 = arith.extui %0 : i1 to i32
    %c0_i32_0 = arith.constant 0 : i32
    %2 = arith.cmpi ne, %1, %c0_i32_0 : i32
    scf.if %2 {
      %c0_56 = arith.constant 0 : index
      %c0_57 = arith.constant 0 : index
      %c0_58 = arith.constant 0 : index
      %194 = vector.load %arg2[%c0_56, %c0_57, %c0_58] : memref<8x2x128xf32, #tpu.memory_space<vmem>>, vector<1x2x128xf32>
      %195 = vector.shape_cast %194 : vector<1x2x128xf32> to vector<2x128xf32>
      %c0_59 = arith.constant 0 : index
      %c0_60 = arith.constant 0 : index
      %196 = vector.load %arg7[%c0_59, %c0_60] : memref<2x128xf32, #tpu.memory_space<vmem>>, vector<2x128xf32>
      tpu.vector_store %arg7[%c0_59, %c0_60], %195 {strides = array<i32>} : memref<2x128xf32, #tpu.memory_space<vmem>>, vector<2x128xf32>,
    } else {
    }
    %c0 = arith.constant 0 : index
    %c0_1 = arith.constant 0 : index
    %3 = vector.load %arg5[%c0, %c0_1] : memref<2x2xf32, #tpu.memory_space<vmem>>, vector<2x2xf32>
    %4 = vector.shape_cast %3 : vector<2x2xf32> to vector<2x2x1xf32>
    %c0_2 = arith.constant 0 : index
    %c0_3 = arith.constant 0 : index
    %5 = vector.load %arg7[%c0_2, %c0_3] : memref<2x128xf32, #tpu.memory_space<vmem>>, vector<2x128xf32>
    %c0_i32_4 = arith.constant 0 : i32
    %6 = arith.index_cast %c0_i32_4 : i32 to index
    %c0_5 = arith.constant 0 : index
    %c0_6 = arith.constant 0 : index
    %7 = vector.load %arg2[%6, %c0_5, %c0_6] : memref<8x2x128xf32, #tpu.memory_space<vmem>>, vector<1x2x128xf32>
    %8 = vector.shape_cast %7 : vector<1x2x128xf32> to vector<2x128xf32>
    %9 = arith.index_cast %c0_i32_4 : i32 to index
    %c0_7 = arith.constant 0 : index
    %10 = vector.load %arg3[%9, %c0_7] : memref<8x128xf32, #tpu.memory_space<vmem>>, vector<1x128xf32>
    %11 = vector.shape_cast %5 : vector<2x128xf32> to vector<2x1x128xf32>
    %12 = vector.broadcast %11 : vector<2x1x128xf32> to vector<2x2x128xf32>
    %13 = vector.broadcast %4 : vector<2x2x1xf32> to vector<2x2x128xf32>
    %14 = arith.addf %12, %13 : vector<2x2x128xf32>
    %cst = arith.constant dense<0xFF800000> : vector<2x128xf32>
    %15 = vector.multi_reduction <maximumf>, %14, %cst [0] : vector<2x2x128xf32> to vector<2x128xf32>
    %16 = vector.shape_cast %15 : vector<2x128xf32> to vector<1x2x128xf32>
    %17 = vector.broadcast %16 : vector<1x2x128xf32> to vector<2x2x128xf32>
    %18 = arith.subf %14, %17 : vector<2x2x128xf32>
    %19 = math.exp %18 : vector<2x2x128xf32>
    %cst_8 = arith.constant dense<0.000000e+00> : vector<2x128xf32>
    %20 = vector.multi_reduction <add>, %19, %cst_8 [0] : vector<2x2x128xf32> to vector<2x128xf32>
    %21 = arith.addf %8, %15 : vector<2x128xf32>
    %22 = math.log %20 : vector<2x128xf32>
    %23 = arith.addf %21, %22 : vector<2x128xf32>
    %cst_9 = arith.constant 0.000000e+00 : f32
    %24 = vector.broadcast %cst_9 : f32 to vector<1x128xf32>
    %25 = arith.cmpf ogt, %10, %24 : vector<1x128xf32>
    %26 = vector.shape_cast %25 : vector<1x128xi1> to vector<1x128xi1>
    %27 = vector.broadcast %26 : vector<1x128xi1> to vector<2x128xi1>
    %28 = arith.select %27, %23, %5 : vector<2x128xi1>, vector<2x128xf32>
    %c1_i32 = arith.constant 1 : i32
    %29 = arith.index_cast %c1_i32 : i32 to index
    %c0_10 = arith.constant 0 : index
    %c0_11 = arith.constant 0 : index
    %30 = vector.load %arg2[%29, %c0_10, %c0_11] : memref<8x2x128xf32, #tpu.memory_space<vmem>>, vector<1x2x128xf32>
    %31 = vector.shape_cast %30 : vector<1x2x128xf32> to vector<2x128xf32>
    %32 = arith.index_cast %c1_i32 : i32 to index
    %c0_12 = arith.constant 0 : index
    %33 = vector.load %arg3[%32, %c0_12] : memref<8x128xf32, #tpu.memory_space<vmem>>, vector<1x128xf32>
    %34 = vector.shape_cast %28 : vector<2x128xf32> to vector<2x1x128xf32>
    %35 = vector.broadcast %34 : vector<2x1x128xf32> to vector<2x2x128xf32>
    %36 = vector.broadcast %4 : vector<2x2x1xf32> to vector<2x2x128xf32>
    %37 = arith.addf %35, %36 : vector<2x2x128xf32>
    %cst_13 = arith.constant dense<0xFF800000> : vector<2x128xf32>
    %38 = vector.multi_reduction <maximumf>, %37, %cst_13 [0] : vector<2x2x128xf32> to vector<2x128xf32>
    %39 = vector.shape_cast %38 : vector<2x128xf32> to vector<1x2x128xf32>
    %40 = vector.broadcast %39 : vector<1x2x128xf32> to vector<2x2x128xf32>
    %41 = arith.subf %37, %40 : vector<2x2x128xf32>
    %42 = math.exp %41 : vector<2x2x128xf32>
    %cst_14 = arith.constant dense<0.000000e+00> : vector<2x128xf32>
    %43 = vector.multi_reduction <add>, %42, %cst_14 [0] : vector<2x2x128xf32> to vector<2x128xf32>
    %44 = arith.addf %31, %38 : vector<2x128xf32>
    %45 = math.log %43 : vector<2x128xf32>
    %46 = arith.addf %44, %45 : vector<2x128xf32>
    %cst_15 = arith.constant 0.000000e+00 : f32
    %47 = vector.broadcast %cst_15 : f32 to vector<1x128xf32>
    %48 = arith.cmpf ogt, %33, %47 : vector<1x128xf32>
    %49 = vector.shape_cast %48 : vector<1x128xi1> to vector<1x128xi1>
    %50 = vector.broadcast %49 : vector<1x128xi1> to vector<2x128xi1>
    %51 = arith.select %50, %46, %28 : vector<2x128xi1>, vector<2x128xf32>
    %c2_i32 = arith.constant 2 : i32
    %52 = arith.index_cast %c2_i32 : i32 to index
    %c0_16 = arith.constant 0 : index
    %c0_17 = arith.constant 0 : index
    %53 = vector.load %arg2[%52, %c0_16, %c0_17] : memref<8x2x128xf32, #tpu.memory_space<vmem>>, vector<1x2x128xf32>
    %54 = vector.shape_cast %53 : vector<1x2x128xf32> to vector<2x128xf32>
    %55 = arith.index_cast %c2_i32 : i32 to index
    %c0_18 = arith.constant 0 : index
    %56 = vector.load %arg3[%55, %c0_18] : memref<8x128xf32, #tpu.memory_space<vmem>>, vector<1x128xf32>
    %57 = vector.shape_cast %51 : vector<2x128xf32> to vector<2x1x128xf32>
    %58 = vector.broadcast %57 : vector<2x1x128xf32> to vector<2x2x128xf32>
    %59 = vector.broadcast %4 : vector<2x2x1xf32> to vector<2x2x128xf32>
    %60 = arith.addf %58, %59 : vector<2x2x128xf32>
    %cst_19 = arith.constant dense<0xFF800000> : vector<2x128xf32>
    %61 = vector.multi_reduction <maximumf>, %60, %cst_19 [0] : vector<2x2x128xf32> to vector<2x128xf32>
    %62 = vector.shape_cast %61 : vector<2x128xf32> to vector<1x2x128xf32>
    %63 = vector.broadcast %62 : vector<1x2x128xf32> to vector<2x2x128xf32>
    %64 = arith.subf %60, %63 : vector<2x2x128xf32>
    %65 = math.exp %64 : vector<2x2x128xf32>
    %cst_20 = arith.constant dense<0.000000e+00> : vector<2x128xf32>
    %66 = vector.multi_reduction <add>, %65, %cst_20 [0] : vector<2x2x128xf32> to vector<2x128xf32>
    %67 = arith.addf %54, %61 : vector<2x128xf32>
    %68 = math.log %66 : vector<2x128xf32>
    %69 = arith.addf %67, %68 : vector<2x128xf32>
    %cst_21 = arith.constant 0.000000e+00 : f32
    %70 = vector.broadcast %cst_21 : f32 to vector<1x128xf32>
    %71 = arith.cmpf ogt, %56, %70 : vector<1x128xf32>
    %72 = vector.shape_cast %71 : vector<1x128xi1> to vector<1x128xi1>
    %73 = vector.broadcast %72 : vector<1x128xi1> to vector<2x128xi1>
    %74 = arith.select %73, %69, %51 : vector<2x128xi1>, vector<2x128xf32>
    %c3_i32 = arith.constant 3 : i32
    %75 = arith.index_cast %c3_i32 : i32 to index
    %c0_22 = arith.constant 0 : index
    %c0_23 = arith.constant 0 : index
    %76 = vector.load %arg2[%75, %c0_22, %c0_23] : memref<8x2x128xf32, #tpu.memory_space<vmem>>, vector<1x2x128xf32>
    %77 = vector.shape_cast %76 : vector<1x2x128xf32> to vector<2x128xf32>
    %78 = arith.index_cast %c3_i32 : i32 to index
    %c0_24 = arith.constant 0 : index
    %79 = vector.load %arg3[%78, %c0_24] : memref<8x128xf32, #tpu.memory_space<vmem>>, vector<1x128xf32>
    %80 = vector.shape_cast %74 : vector<2x128xf32> to vector<2x1x128xf32>
    %81 = vector.broadcast %80 : vector<2x1x128xf32> to vector<2x2x128xf32>
    %82 = vector.broadcast %4 : vector<2x2x1xf32> to vector<2x2x128xf32>
    %83 = arith.addf %81, %82 : vector<2x2x128xf32>
    %cst_25 = arith.constant dense<0xFF800000> : vector<2x128xf32>
    %84 = vector.multi_reduction <maximumf>, %83, %cst_25 [0] : vector<2x2x128xf32> to vector<2x128xf32>
    %85 = vector.shape_cast %84 : vector<2x128xf32> to vector<1x2x128xf32>
    %86 = vector.broadcast %85 : vector<1x2x128xf32> to vector<2x2x128xf32>
    %87 = arith.subf %83, %86 : vector<2x2x128xf32>
    %88 = math.exp %87 : vector<2x2x128xf32>
    %cst_26 = arith.constant dense<0.000000e+00> : vector<2x128xf32>
    %89 = vector.multi_reduction <add>, %88, %cst_26 [0] : vector<2x2x128xf32> to vector<2x128xf32>
    %90 = arith.addf %77, %84 : vector<2x128xf32>
    %91 = math.log %89 : vector<2x128xf32>
    %92 = arith.addf %90, %91 : vector<2x128xf32>
    %cst_27 = arith.constant 0.000000e+00 : f32
    %93 = vector.broadcast %cst_27 : f32 to vector<1x128xf32>
    %94 = arith.cmpf ogt, %79, %93 : vector<1x128xf32>
    %95 = vector.shape_cast %94 : vector<1x128xi1> to vector<1x128xi1>
    %96 = vector.broadcast %95 : vector<1x128xi1> to vector<2x128xi1>
    %97 = arith.select %96, %92, %74 : vector<2x128xi1>, vector<2x128xf32>
    %c4_i32 = arith.constant 4 : i32
    %98 = arith.index_cast %c4_i32 : i32 to index
    %c0_28 = arith.constant 0 : index
    %c0_29 = arith.constant 0 : index
    %99 = vector.load %arg2[%98, %c0_28, %c0_29] : memref<8x2x128xf32, #tpu.memory_space<vmem>>, vector<1x2x128xf32>
    %100 = vector.shape_cast %99 : vector<1x2x128xf32> to vector<2x128xf32>
    %101 = arith.index_cast %c4_i32 : i32 to index
    %c0_30 = arith.constant 0 : index
    %102 = vector.load %arg3[%101, %c0_30] : memref<8x128xf32, #tpu.memory_space<vmem>>, vector<1x128xf32>
    %103 = vector.shape_cast %97 : vector<2x128xf32> to vector<2x1x128xf32>
    %104 = vector.broadcast %103 : vector<2x1x128xf32> to vector<2x2x128xf32>
    %105 = vector.broadcast %4 : vector<2x2x1xf32> to vector<2x2x128xf32>
    %106 = arith.addf %104, %105 : vector<2x2x128xf32>
    %cst_31 = arith.constant dense<0xFF800000> : vector<2x128xf32>
    %107 = vector.multi_reduction <maximumf>, %106, %cst_31 [0] : vector<2x2x128xf32> to vector<2x128xf32>
    %108 = vector.shape_cast %107 : vector<2x128xf32> to vector<1x2x128xf32>
    %109 = vector.broadcast %108 : vector<1x2x128xf32> to vector<2x2x128xf32>
    %110 = arith.subf %106, %109 : vector<2x2x128xf32>
    %111 = math.exp %110 : vector<2x2x128xf32>
    %cst_32 = arith.constant dense<0.000000e+00> : vector<2x128xf32>
    %112 = vector.multi_reduction <add>, %111, %cst_32 [0] : vector<2x2x128xf32> to vector<2x128xf32>
    %113 = arith.addf %100, %107 : vector<2x128xf32>
    %114 = math.log %112 : vector<2x128xf32>
    %115 = arith.addf %113, %114 : vector<2x128xf32>
    %cst_33 = arith.constant 0.000000e+00 : f32
    %116 = vector.broadcast %cst_33 : f32 to vector<1x128xf32>
    %117 = arith.cmpf ogt, %102, %116 : vector<1x128xf32>
    %118 = vector.shape_cast %117 : vector<1x128xi1> to vector<1x128xi1>
    %119 = vector.broadcast %118 : vector<1x128xi1> to vector<2x128xi1>
    %120 = arith.select %119, %115, %97 : vector<2x128xi1>, vector<2x128xf32>
    %c5_i32 = arith.constant 5 : i32
    %121 = arith.index_cast %c5_i32 : i32 to index
    %c0_34 = arith.constant 0 : index
    %c0_35 = arith.constant 0 : index
    %122 = vector.load %arg2[%121, %c0_34, %c0_35] : memref<8x2x128xf32, #tpu.memory_space<vmem>>, vector<1x2x128xf32>
    %123 = vector.shape_cast %122 : vector<1x2x128xf32> to vector<2x128xf32>
    %124 = arith.index_cast %c5_i32 : i32 to index
    %c0_36 = arith.constant 0 : index
    %125 = vector.load %arg3[%124, %c0_36] : memref<8x128xf32, #tpu.memory_space<vmem>>, vector<1x128xf32>
    %126 = vector.shape_cast %120 : vector<2x128xf32> to vector<2x1x128xf32>
    %127 = vector.broadcast %126 : vector<2x1x128xf32> to vector<2x2x128xf32>
    %128 = vector.broadcast %4 : vector<2x2x1xf32> to vector<2x2x128xf32>
    %129 = arith.addf %127, %128 : vector<2x2x128xf32>
    %cst_37 = arith.constant dense<0xFF800000> : vector<2x128xf32>
    %130 = vector.multi_reduction <maximumf>, %129, %cst_37 [0] : vector<2x2x128xf32> to vector<2x128xf32>
    %131 = vector.shape_cast %130 : vector<2x128xf32> to vector<1x2x128xf32>
    %132 = vector.broadcast %131 : vector<1x2x128xf32> to vector<2x2x128xf32>
    %133 = arith.subf %129, %132 : vector<2x2x128xf32>
    %134 = math.exp %133 : vector<2x2x128xf32>
    %cst_38 = arith.constant dense<0.000000e+00> : vector<2x128xf32>
    %135 = vector.multi_reduction <add>, %134, %cst_38 [0] : vector<2x2x128xf32> to vector<2x128xf32>
    %136 = arith.addf %123, %130 : vector<2x128xf32>
    %137 = math.log %135 : vector<2x128xf32>
    %138 = arith.addf %136, %137 : vector<2x128xf32>
    %cst_39 = arith.constant 0.000000e+00 : f32
    %139 = vector.broadcast %cst_39 : f32 to vector<1x128xf32>
    %140 = arith.cmpf ogt, %125, %139 : vector<1x128xf32>
    %141 = vector.shape_cast %140 : vector<1x128xi1> to vector<1x128xi1>
    %142 = vector.broadcast %141 : vector<1x128xi1> to vector<2x128xi1>
    %143 = arith.select %142, %138, %120 : vector<2x128xi1>, vector<2x128xf32>
    %c6_i32 = arith.constant 6 : i32
    %144 = arith.index_cast %c6_i32 : i32 to index
    %c0_40 = arith.constant 0 : index
    %c0_41 = arith.constant 0 : index
    %145 = vector.load %arg2[%144, %c0_40, %c0_41] : memref<8x2x128xf32, #tpu.memory_space<vmem>>, vector<1x2x128xf32>
    %146 = vector.shape_cast %145 : vector<1x2x128xf32> to vector<2x128xf32>
    %147 = arith.index_cast %c6_i32 : i32 to index
    %c0_42 = arith.constant 0 : index
    %148 = vector.load %arg3[%147, %c0_42] : memref<8x128xf32, #tpu.memory_space<vmem>>, vector<1x128xf32>
    %149 = vector.shape_cast %143 : vector<2x128xf32> to vector<2x1x128xf32>
    %150 = vector.broadcast %149 : vector<2x1x128xf32> to vector<2x2x128xf32>
    %151 = vector.broadcast %4 : vector<2x2x1xf32> to vector<2x2x128xf32>
    %152 = arith.addf %150, %151 : vector<2x2x128xf32>
    %cst_43 = arith.constant dense<0xFF800000> : vector<2x128xf32>
    %153 = vector.multi_reduction <maximumf>, %152, %cst_43 [0] : vector<2x2x128xf32> to vector<2x128xf32>
    %154 = vector.shape_cast %153 : vector<2x128xf32> to vector<1x2x128xf32>
    %155 = vector.broadcast %154 : vector<1x2x128xf32> to vector<2x2x128xf32>
    %156 = arith.subf %152, %155 : vector<2x2x128xf32>
    %157 = math.exp %156 : vector<2x2x128xf32>
    %cst_44 = arith.constant dense<0.000000e+00> : vector<2x128xf32>
    %158 = vector.multi_reduction <add>, %157, %cst_44 [0] : vector<2x2x128xf32> to vector<2x128xf32>
    %159 = arith.addf %146, %153 : vector<2x128xf32>
    %160 = math.log %158 : vector<2x128xf32>
    %161 = arith.addf %159, %160 : vector<2x128xf32>
    %cst_45 = arith.constant 0.000000e+00 : f32
    %162 = vector.broadcast %cst_45 : f32 to vector<1x128xf32>
    %163 = arith.cmpf ogt, %148, %162 : vector<1x128xf32>
    %164 = vector.shape_cast %163 : vector<1x128xi1> to vector<1x128xi1>
    %165 = vector.broadcast %164 : vector<1x128xi1> to vector<2x128xi1>
    %166 = arith.select %165, %161, %143 : vector<2x128xi1>, vector<2x128xf32>
    %c7_i32 = arith.constant 7 : i32
    %167 = arith.index_cast %c7_i32 : i32 to index
    %c0_46 = arith.constant 0 : index
    %c0_47 = arith.constant 0 : index
    %168 = vector.load %arg2[%167, %c0_46, %c0_47] : memref<8x2x128xf32, #tpu.memory_space<vmem>>, vector<1x2x128xf32>
    %169 = vector.shape_cast %168 : vector<1x2x128xf32> to vector<2x128xf32>
    %170 = arith.index_cast %c7_i32 : i32 to index
    %c0_48 = arith.constant 0 : index
    %171 = vector.load %arg3[%170, %c0_48] : memref<8x128xf32, #tpu.memory_space<vmem>>, vector<1x128xf32>
    %172 = vector.shape_cast %166 : vector<2x128xf32> to vector<2x1x128xf32>
    %173 = vector.broadcast %172 : vector<2x1x128xf32> to vector<2x2x128xf32>
    %174 = vector.broadcast %4 : vector<2x2x1xf32> to vector<2x2x128xf32>
    %175 = arith.addf %173, %174 : vector<2x2x128xf32>
    %cst_49 = arith.constant dense<0xFF800000> : vector<2x128xf32>
    %176 = vector.multi_reduction <maximumf>, %175, %cst_49 [0] : vector<2x2x128xf32> to vector<2x128xf32>
    %177 = vector.shape_cast %176 : vector<2x128xf32> to vector<1x2x128xf32>
    %178 = vector.broadcast %177 : vector<1x2x128xf32> to vector<2x2x128xf32>
    %179 = arith.subf %175, %178 : vector<2x2x128xf32>
    %180 = math.exp %179 : vector<2x2x128xf32>
    %cst_50 = arith.constant dense<0.000000e+00> : vector<2x128xf32>
    %181 = vector.multi_reduction <add>, %180, %cst_50 [0] : vector<2x2x128xf32> to vector<2x128xf32>
    %182 = arith.addf %169, %176 : vector<2x128xf32>
    %183 = math.log %181 : vector<2x128xf32>
    %184 = arith.addf %182, %183 : vector<2x128xf32>
    %cst_51 = arith.constant 0.000000e+00 : f32
    %185 = vector.broadcast %cst_51 : f32 to vector<1x128xf32>
    %186 = arith.cmpf ogt, %171, %185 : vector<1x128xf32>
    %187 = vector.shape_cast %186 : vector<1x128xi1> to vector<1x128xi1>
    %188 = vector.broadcast %187 : vector<1x128xi1> to vector<2x128xi1>
    %189 = arith.select %188, %184, %166 : vector<2x128xi1>, vector<2x128xf32>
    %c8_i32 = arith.constant 8 : i32
    %c0_52 = arith.constant 0 : index
    %c0_53 = arith.constant 0 : index
    %190 = vector.load %arg7[%c0_52, %c0_53] : memref<2x128xf32, #tpu.memory_space<vmem>>, vector<2x128xf32>
    tpu.vector_store %arg7[%c0_52, %c0_53], %189 {strides = array<i32>} : memref<2x128xf32, #tpu.memory_space<vmem>>, vector<2x128xf32>,
    %c0_i32_54 = arith.constant 0 : i32
    %191 = arith.cmpi eq, %arg1, %c0_i32_54 : i32
    %192 = arith.extui %191 : i1 to i32
    %c0_i32_55 = arith.constant 0 : i32
    %193 = arith.cmpi ne, %192, %c0_i32_55 : i32
    scf.if %193 {
      %c0_56 = arith.constant 0 : index
      %c0_57 = arith.constant 0 : index
      %194 = vector.load %arg4[%c0_56, %c0_57] : memref<2x1xf32, #tpu.memory_space<vmem>>, vector<2x1xf32>
      %195 = vector.broadcast %194 : vector<2x1xf32> to vector<2x128xf32>
      %196 = arith.addf %189, %195 : vector<2x128xf32>
      %cst_58 = arith.constant dense<0xFF800000> : vector<128xf32>
      %197 = vector.multi_reduction <maximumf>, %196, %cst_58 [0] : vector<2x128xf32> to vector<128xf32>
      %198 = vector.shape_cast %197 : vector<128xf32> to vector<1x128xf32>
      %199 = vector.broadcast %198 : vector<1x128xf32> to vector<2x128xf32>
      %200 = arith.subf %196, %199 : vector<2x128xf32>
      %201 = math.exp %200 : vector<2x128xf32>
      %cst_59 = arith.constant dense<0.000000e+00> : vector<128xf32>
      %202 = vector.multi_reduction <add>, %201, %cst_59 [0] : vector<2x128xf32> to vector<128xf32>
      %203 = vector.shape_cast %202 : vector<128xf32> to vector<1x128xf32>
      %204 = math.log %203 : vector<1x128xf32>
      %205 = arith.addf %198, %204 : vector<1x128xf32>
      %c0_60 = arith.constant 0 : index
      %c0_61 = arith.constant 0 : index
      %206 = vector.load %arg6[%c0_60, %c0_61] : memref<1x128xf32, #tpu.memory_space<vmem>>, vector<1x128xf32>
      tpu.vector_store %arg6[%c0_60, %c0_61], %205 {strides = array<i32>} : memref<1x128xf32, #tpu.memory_space<vmem>>, vector<1x128xf32>,
    } else {
    }
    return
  }
  func.func @transform_0(%arg0: i32, %arg1: i32) -> (i32, i32, i32) {
    %c0_i32 = arith.constant 0 : i32
    %c0_i32_0 = arith.constant 0 : i32
    return %arg1, %c0_i32, %arg0 : i32, i32, i32
  }
  func.func @transform_1(%arg0: i32, %arg1: i32) -> (i32, i32) {
    %c0_i32 = arith.constant 0 : i32
    return %arg1, %arg0 : i32, i32
  }
  func.func @transform_2(%arg0: i32, %arg1: i32) -> (i32, i32) {
    %c0_i32 = arith.constant 0 : i32
    %c0_i32_0 = arith.constant 0 : i32
    %c0_i32_1 = arith.constant 0 : i32
    return %c0_i32, %c0_i32_0 : i32, i32
  }
  func.func @transform_3(%arg0: i32, %arg1: i32) -> (i32, i32) {
    %c0_i32 = arith.constant 0 : i32
    %c0_i32_0 = arith.constant 0 : i32
    %c0_i32_1 = arith.constant 0 : i32
    return %c0_i32, %c0_i32_0 : i32, i32
  }
  func.func @transform_4(%arg0: i32, %arg1: i32) -> (i32, i32) {
    %c0_i32 = arith.constant 0 : i32
    %c0_i32_0 = arith.constant 0 : i32
    return %c0_i32, %arg0 : i32, i32
  }
}

</mosaic_0001>

<llo_original>
// kernel: crf_forward.1
$region0: #{crf_forward.1}
  #allocation0 [shape = 'u32[]', space=smem, size = 0x4, offset = 0x4, fixed_abs, tag = 'smem constant byte address 0x4 - core index']
  #allocation1 [shape = 'u32[72,128]{1,0:T(1,128)}', space=vmem, size = 0x9000, scoped, tag = 'internal scratch']
  #allocation2 [shape = 'f32[2,128]{1,0:T(2,128)}', space=vmem, size = 0x400, scoped, tag = 'scratch operand']
  %s0 = inlined_call_operand.vmem [shape: f32[8,2,128], index: 0, kind: input, shape index: {}]
  %s1 = inlined_call_operand.vmem [shape: f32[8,128], index: 1, kind: input, shape index: {}]
  %s2 = inlined_call_operand.vmem [shape: f32[2,1], index: 2, kind: input, shape index: {}]
  %s3 = inlined_call_operand.vmem [shape: f32[2,2], index: 3, kind: input, shape index: {}]
  %s4 = inlined_call_operand.vmem [shape: f32[1,128], index: 4, kind: output, shape index: {}]
  %s5 = sld [smem:[#allocation0]]
  $region34: #{crf_forward.1} parent=0
    _
  %s7 = ssub.s32 1, %s5
  %s8 = scalar_select 0, %s7, %s5
  // Predicated region
  $region2: #{crf_forward.1} parent=0 // pred_check
    _
  $region3: #{crf_forward.1} parent=0 // pred_check_branch
    %10 = sbr.rel (0) target = $region5
  $region4: #{crf_forward.1} parent=0 // pred_region
    _
  $region5: #{crf_forward.1} parent=0 // pred_fallthru
    _
  // Predicated region
  $region6: #{crf_forward.1} parent=0 // pred_check
    _
  $region7: #{crf_forward.1} parent=0 // pred_check_branch
    %12 = sbr.rel (0) target = $region9
  $region8: #{crf_forward.1} parent=0 // pred_region
    _
  $region9: #{crf_forward.1} parent=0 // pred_fallthru
    _
  // Predicated region
  $region10: #{crf_forward.1} parent=0 // pred_check
    _
  $region11: #{crf_forward.1} parent=0 // pred_check_branch
    %14 = sbr.rel (0) target = $region13
  $region12: #{crf_forward.1} parent=0 // pred_region
    _
  $region13: #{crf_forward.1} parent=0 // pred_fallthru
    _
  // Predicated region
  $region14: #{crf_forward.1} parent=0 // pred_check
    _
  $region15: #{crf_forward.1} parent=0 // pred_check_branch
    %16 = sbr.rel (0) target = $region17
  $region16: #{crf_forward.1} parent=0 // pred_region
    _
  $region17: #{crf_forward.1} parent=0 // pred_fallthru
    _
  %p17 = scmp.eq.s32.totalorder 0, 0
  // Predicated region
  $region18: #{crf_forward.1} parent=0 // pred_check
    %p18 = pneg %p17
  $region19: #{crf_forward.1} parent=0 // pred_check_branch
    %20 = sbr.rel (%p18) target = $region21
  $region20: #{crf_forward.1} parent=0 // pred_region
    %v21 = vld [vmem:[%s0] sm:$0x3]
    %22 = vst [vmem:[#allocation2] sm:$0x3] %v21
  $region21: #{crf_forward.1} parent=0 // pred_fallthru
    _
  %v23 = vld [vmem:[%s3] sm:$0x3]
  %v24 = vperm.slane %v23, 0
  %v25 = vlaneseq
  %v26 = vshrl.u32 %v25, 7
  %28 = vset.pattern.permute.xlu0 %v26
  %29 = vperm.xlu0 %28, %v24
  %v30 = vpop.permute.xlu0 %29
  %v31 = vperm.slane %v23, 1
  %v32 = vlaneseq
  %v33 = vshrl.u32 %v32, 7
  %35 = vset.pattern.permute.xlu0 %v33
  %36 = vperm.xlu0 %35, %v31
  %v37 = vpop.permute.xlu0 %36
  %v38 = vld [vmem:[#allocation2] sm:$0x3]
  %v39 = vld [vmem:[%s0] sm:$0x3]
  %v40 = vld [vmem:[%s1] sm:$0x1]
  %v42 = vrot.slane %v38, 1
  %v43 = vperm.slane %v38, 0
  %v44 = vperm.slane %v42, 0
  %v47 = vadd.f32 %v43, %v30
  %v48 = vadd.f32 %v44, %v37
  %vm49 = vcmask 1041408
  %v50 = vsel %vm49, %v47, -inf
  %v51 = vsel %vm49, %v48, -inf
  %v52 = vmax.f32 %v50, %v51
  %v53 = vsub.f32 %v47, %v52
  %v54 = vsub.f32 %v48, %v52
  %v55 = vmul.f32 %v53, 1.442695
  %v56 = vpow.pop %v55
  %v57 = vmul.f32 %v54, 1.442695
  %v58 = vpow.pop %v57
  %v59 = vsel %vm49, %v56, 0.0
  %v60 = vsel %vm49, %v58, 0.0
  %v61 = vadd.f32 %v59, %v60
  %v62 = vadd.f32 %v39, %v52
  %v63 = vlog2.pop %v61
  %v64 = vmul.f32 %v63, 0.6931472
  %v65 = vadd.f32 %v62, %v64
  %vm66 = vcmp.gt.f32.partialorder %v40, 0.0
  %v67 = vsel %vm66, 1, 0
  %v68 = vperm.slane %v67, 0
  %vm69 = vcmp.eq.s32.totalorder %v68, 1
  %v70 = vsel %vm69, %v65, %v38
  %s71 = scalar_lea.vmem %s0, 2
  %v72 = vld [vmem:[%s71] sm:$0x3]
  %v73 = vld [vmem:[%s1 + $0x1] sm:$0x1]
  %v75 = vrot.slane %v70, 1
  %v76 = vperm.slane %v70, 0
  %v77 = vperm.slane %v75, 0
  %v80 = vadd.f32 %v76, %v30
  %v81 = vadd.f32 %v77, %v37
  %v82 = vsel %vm49, %v80, -inf
  %v83 = vsel %vm49, %v81, -inf
  %v84 = vmax.f32 %v82, %v83
  %v85 = vsub.f32 %v80, %v84
  %v86 = vsub.f32 %v81, %v84
  %v87 = vmul.f32 %v85, 1.442695
  %v88 = vpow.pop %v87
  %v89 = vmul.f32 %v86, 1.442695
  %v90 = vpow.pop %v89
  %v91 = vsel %vm49, %v88, 0.0
  %v92 = vsel %vm49, %v90, 0.0
  %v93 = vadd.f32 %v91, %v92
  %v94 = vadd.f32 %v72, %v84
  %v95 = vlog2.pop %v93
  %v96 = vmul.f32 %v95, 0.6931472
  %v97 = vadd.f32 %v94, %v96
  %vm98 = vcmp.gt.f32.partialorder %v73, 0.0
  %v99 = vsel %vm98, 1, 0
  %v100 = vperm.slane %v99, 0
  %vm101 = vcmp.eq.s32.totalorder %v100, 1
  %v102 = vsel %vm101, %v97, %v70
  %s103 = scalar_lea.vmem %s0, 4
  %v104 = vld [vmem:[%s103] sm:$0x3]
  %v105 = vld [vmem:[%s1 + $0x2] sm:$0x1]
  %v107 = vrot.slane %v102, 1
  %v108 = vperm.slane %v102, 0
  %v109 = vperm.slane %v107, 0
  %v112 = vadd.f32 %v108, %v30
  %v113 = vadd.f32 %v109, %v37
  %v114 = vsel %vm49, %v112, -inf
  %v115 = vsel %vm49, %v113, -inf
  %v116 = vmax.f32 %v114, %v115
  %v117 = vsub.f32 %v112, %v116
  %v118 = vsub.f32 %v113, %v116
  %v119 = vmul.f32 %v117, 1.442695
  %v120 = vpow.pop %v119
  %v121 = vmul.f32 %v118, 1.442695
  %v122 = vpow.pop %v121
  %v123 = vsel %vm49, %v120, 0.0
  %v124 = vsel %vm49, %v122, 0.0
  %v125 = vadd.f32 %v123, %v124
  %v126 = vadd.f32 %v104, %v116
  %v127 = vlog2.pop %v125
  %v128 = vmul.f32 %v127, 0.6931472
  %v129 = vadd.f32 %v126, %v128
  %vm130 = vcmp.gt.f32.partialorder %v105, 0.0
  %v131 = vsel %vm130, 1, 0
  %v132 = vperm.slane %v131, 0
  %vm133 = vcmp.eq.s32.totalorder %v132, 1
  %v134 = vsel %vm133, %v129, %v102
  %s135 = scalar_lea.vmem %s0, 6
  %v136 = vld [vmem:[%s135] sm:$0x3]
  %v137 = vld [vmem:[%s1 + $0x3] sm:$0x1]
  %v139 = vrot.slane %v134, 1
  %v140 = vperm.slane %v134, 0
  %v141 = vperm.slane %v139, 0
  %v144 = vadd.f32 %v140, %v30
  %v145 = vadd.f32 %v141, %v37
  %v146 = vsel %vm49, %v144, -inf
  %v147 = vsel %vm49, %v145, -inf
  %v148 = vmax.f32 %v146, %v147
  %v149 = vsub.f32 %v144, %v148
  %v150 = vsub.f32 %v145, %v148
  %v151 = vmul.f32 %v149, 1.442695
  %v152 = vpow.pop %v151
  %v153 = vmul.f32 %v150, 1.442695
  %v154 = vpow.pop %v153
  %v155 = vsel %vm49, %v152, 0.0
  %v156 = vsel %vm49, %v154, 0.0
  %v157 = vadd.f32 %v155, %v156
  %v158 = vadd.f32 %v136, %v148
  %v159 = vlog2.pop %v157
  %v160 = vmul.f32 %v159, 0.6931472
  %v161 = vadd.f32 %v158, %v160
  %vm162 = vcmp.gt.f32.partialorder %v137, 0.0
  %v163 = vsel %vm162, 1, 0
  %v164 = vperm.slane %v163, 0
  %vm165 = vcmp.eq.s32.totalorder %v164, 1
  %v166 = vsel %vm165, %v161, %v134
  %s167 = scalar_lea.vmem %s0, 8
  %v168 = vld [vmem:[%s167] sm:$0x3]
  %v169 = vld [vmem:[%s1 + $0x4] sm:$0x1]
  %v171 = vrot.slane %v166, 1
  %v172 = vperm.slane %v166, 0
  %v173 = vperm.slane %v171, 0
  %v176 = vadd.f32 %v172, %v30
  %v177 = vadd.f32 %v173, %v37
  %v178 = vsel %vm49, %v176, -inf
  %v179 = vsel %vm49, %v177, -inf
  %v180 = vmax.f32 %v178, %v179
  %v181 = vsub.f32 %v176, %v180
  %v182 = vsub.f32 %v177, %v180
  %v183 = vmul.f32 %v181, 1.442695
  %v184 = vpow.pop %v183
  %v185 = vmul.f32 %v182, 1.442695
  %v186 = vpow.pop %v185
  %v187 = vsel %vm49, %v184, 0.0
  %v188 = vsel %vm49, %v186, 0.0
  %v189 = vadd.f32 %v187, %v188
  %v190 = vadd.f32 %v168, %v180
  %v191 = vlog2.pop %v189
  %v192 = vmul.f32 %v191, 0.6931472
  %v193 = vadd.f32 %v190, %v192
  %vm194 = vcmp.gt.f32.partialorder %v169, 0.0
  %v195 = vsel %vm194, 1, 0
  %v196 = vperm.slane %v195, 0
  %vm197 = vcmp.eq.s32.totalorder %v196, 1
  %v198 = vsel %vm197, %v193, %v166
  %s199 = scalar_lea.vmem %s0, 10
  %v200 = vld [vmem:[%s199] sm:$0x3]
  %v201 = vld [vmem:[%s1 + $0x5] sm:$0x1]
  %v203 = vrot.slane %v198, 1
  %v204 = vperm.slane %v198, 0
  %v205 = vperm.slane %v203, 0
  %v208 = vadd.f32 %v204, %v30
  %v209 = vadd.f32 %v205, %v37
  %v210 = vsel %vm49, %v208, -inf
  %v211 = vsel %vm49, %v209, -inf
  %v212 = vmax.f32 %v210, %v211
  %v213 = vsub.f32 %v208, %v212
  %v214 = vsub.f32 %v209, %v212
  %v215 = vmul.f32 %v213, 1.442695
  %v216 = vpow.pop %v215
  %v217 = vmul.f32 %v214, 1.442695
  %v218 = vpow.pop %v217
  %v219 = vsel %vm49, %v216, 0.0
  %v220 = vsel %vm49, %v218, 0.0
  %v221 = vadd.f32 %v219, %v220
  %v222 = vadd.f32 %v200, %v212
  %v223 = vlog2.pop %v221
  %v224 = vmul.f32 %v223, 0.6931472
  %v225 = vadd.f32 %v222, %v224
  %vm226 = vcmp.gt.f32.partialorder %v201, 0.0
  %v227 = vsel %vm226, 1, 0
  %v228 = vperm.slane %v227, 0
  %vm229 = vcmp.eq.s32.totalorder %v228, 1
  %v230 = vsel %vm229, %v225, %v198
  %s231 = scalar_lea.vmem %s0, 12
  %v232 = vld [vmem:[%s231] sm:$0x3]
  %v233 = vld [vmem:[%s1 + $0x6] sm:$0x1]
  %v235 = vrot.slane %v230, 1
  %v236 = vperm.slane %v230, 0
  %v237 = vperm.slane %v235, 0
  %v240 = vadd.f32 %v236, %v30
  %v241 = vadd.f32 %v237, %v37
  %v242 = vsel %vm49, %v240, -inf
  %v243 = vsel %vm49, %v241, -inf
  %v244 = vmax.f32 %v242, %v243
  %v245 = vsub.f32 %v240, %v244
  %v246 = vsub.f32 %v241, %v244
  %v247 = vmul.f32 %v245, 1.442695
  %v248 = vpow.pop %v247
  %v249 = vmul.f32 %v246, 1.442695
  %v250 = vpow.pop %v249
  %v251 = vsel %vm49, %v248, 0.0
  %v252 = vsel %vm49, %v250, 0.0
  %v253 = vadd.f32 %v251, %v252
  %v254 = vadd.f32 %v232, %v244
  %v255 = vlog2.pop %v253
  %v256 = vmul.f32 %v255, 0.6931472
  %v257 = vadd.f32 %v254, %v256
  %vm258 = vcmp.gt.f32.partialorder %v233, 0.0
  %v259 = vsel %vm258, 1, 0
  %v260 = vperm.slane %v259, 0
  %vm261 = vcmp.eq.s32.totalorder %v260, 1
  %v262 = vsel %vm261, %v257, %v230
  %s263 = scalar_lea.vmem %s0, 14
  %v264 = vld [vmem:[%s263] sm:$0x3]
  %v265 = vld [vmem:[%s1 + $0x7] sm:$0x1]
  %v267 = vrot.slane %v262, 1
  %v268 = vperm.slane %v262, 0
  %v269 = vperm.slane %v267, 0
  %v272 = vadd.f32 %v268, %v30
  %v273 = vadd.f32 %v269, %v37
  %v274 = vsel %vm49, %v272, -inf
  %v275 = vsel %vm49, %v273, -inf
  %v276 = vmax.f32 %v274, %v275
  %v277 = vsub.f32 %v272, %v276
  %v278 = vsub.f32 %v273, %v276
  %v279 = vmul.f32 %v277, 1.442695
  %v280 = vpow.pop %v279
  %v281 = vmul.f32 %v278, 1.442695
  %v282 = vpow.pop %v281
  %v283 = vsel %vm49, %v280, 0.0
  %v284 = vsel %vm49, %v282, 0.0
  %v285 = vadd.f32 %v283, %v284
  %v286 = vadd.f32 %v264, %v276
  %v287 = vlog2.pop %v285
  %v288 = vmul.f32 %v287, 0.6931472
  %v289 = vadd.f32 %v286, %v288
  %vm290 = vcmp.gt.f32.partialorder %v265, 0.0
  %v291 = vsel %vm290, 1, 0
  %v292 = vperm.slane %v291, 0
  %vm293 = vcmp.eq.s32.totalorder %v292, 1
  %v294 = vsel %vm293, %v289, %v262
  %295 = vst [vmem:[#allocation2] sm:$0x3] %v294
  // Predicated region
  $region22: #{crf_forward.1} parent=0 // pred_check
    %p296 = pneg %p17
  $region23: #{crf_forward.1} parent=0 // pred_check_branch
    %298 = sbr.rel (%p296) target = $region25
  $region24: #{crf_forward.1} parent=0 // pred_region
    %v299 = vld [vmem:[%s2] sm:$0x3]
    %301 = vset.pattern.permute.xlu0 0
    %302 = vperm.xlu0 %301, %v299
    %v303 = vpop.permute.xlu0 %302
    %v305 = vadd.f32 %v294, %v303
    %v306 = vsel %vm49, %v305, -inf
    %v307 = vrot.slane %v306, 4
    %v308 = vmax.f32 %v306, %v307
    %v309 = vrot.slane %v308, 2
    %v310 = vmax.f32 %v308, %v309
    %v311 = vrot.slane %v310, 1
    %v312 = vmax.f32 %v310, %v311
    %v313 = vsub.f32 %v305, %v312
    %v314 = vmul.f32 %v313, 1.442695
    %v315 = vpow.pop %v314
    %v316 = vsel %vm49, %v315, 0.0
    %v317 = vrot.slane %v316, 4
    %v318 = vadd.f32 %v316, %v317
    %v319 = vrot.slane %v318, 2
    %v320 = vadd.f32 %v318, %v319
    %v321 = vrot.slane %v320, 1
    %v322 = vadd.f32 %v320, %v321
    %v323 = vlog2.pop %v322
    %v324 = vmul.f32 %v323, 0.6931472
    %v325 = vadd.f32 %v312, %v324
    %326 = vst [vmem:[%s4] sm:$0x1] %v325
  $region25: #{crf_forward.1} parent=0 // pred_fallthru
    _
  // Predicated region
  $region26: #{crf_forward.1} parent=0 // pred_check
    _
  $region27: #{crf_forward.1} parent=0 // pred_check_branch
    %328 = sbr.rel (0) target = $region29
  $region28: #{crf_forward.1} parent=0 // pred_region
    _
  $region29: #{crf_forward.1} parent=0 // pred_fallthru
    _
  // Predicated region
  $region30: #{crf_forward.1} parent=0 // pred_check
    _
  $region31: #{crf_forward.1} parent=0 // pred_check_branch
    %330 = sbr.rel (0) target = $region33
  $region32: #{crf_forward.1} parent=0 // pred_region
    _
  $region33: #{crf_forward.1} parent=0 // pred_fallthru
    _

</llo_original>
